<compile_context>
chip_gen: v7x
topology: tpu7x:2x2x1
jax: 0.10.0
libtpu: 0.0.40
codegen_flags: <defaults>
</compile_context>

<pallas_src>
import jax
import jax.numpy as jnp
from jax.experimental import pallas as pl
from jax.experimental.pallas import tpu as pltpu

EPS = 1e-5

_VMEM_SPEC = pl.BlockSpec(memory_space=pltpu.MemorySpace.VMEM)


# ----------------------------------------------------------------------------
# Pallas kernel: whole MLP fused, single block (everything fits VMEM easily).
#
#   x_ref   : (B, T)  f32   raw transitions (no lane padding)
#   w1_ref  : (T, H)  bf16  spectrally-normalized Linear1 weight (x @ W layout)
#   w23_ref : (H, H)  bf16  fused Linear2 @ Linear3 weight
#   w4_ref  : (H, T)  bf16  Linear4 weight
#   aux_ref : (8, H)  f32   rows: b1, g1, be1, b23, g2, be2, <pad>, <pad>
#   b4_ref  : (1, T)  f32   Linear4 bias
#   o_ref   : (B, T)  f32   output (written directly, no slicing in glue)
# ----------------------------------------------------------------------------
def generator_kernel(x_ref, w1_ref, w23_ref, w4_ref, aux_ref, b4_ref, o_ref):
    b1, g1, be1 = aux_ref[0:1, :], aux_ref[1:2, :], aux_ref[2:3, :]
    b23, g2, be2 = aux_ref[3:4, :], aux_ref[4:5, :], aux_ref[5:6, :]

    # --- Linear 1 (T -> H): bf16 operands, f32 accumulation on the MXU ------
    x = x_ref[...].astype(jnp.bfloat16)
    h = jnp.dot(x, w1_ref[...], preferred_element_type=jnp.float32) + b1

    # --- BatchNorm1d #1 (training-mode batch stats), folded into an affine --
    mean = jnp.mean(h, axis=0, keepdims=True)
    var = jnp.mean(h * h, axis=0, keepdims=True) - mean * mean
    scale = g1 * jax.lax.rsqrt(var + EPS)          # (1, H) row math
    shift = be1 - mean * scale
    h = jnp.maximum(h * scale + shift, 0.0)        # BN + ReLU: one FMA + max

    # --- Fused Linear 2+3 (H -> L -> H collapsed to one (H, H) matmul) ------
    h = jnp.dot(h.astype(jnp.bfloat16), w23_ref[...],
                preferred_element_type=jnp.float32) + b23

    # --- BatchNorm1d #2, folded affine + ReLU --------------------------------
    mean = jnp.mean(h, axis=0, keepdims=True)
    var = jnp.mean(h * h, axis=0, keepdims=True) - mean * mean
    scale = g2 * jax.lax.rsqrt(var + EPS)
    shift = be2 - mean * scale
    h = jnp.maximum(h * scale + shift, 0.0)

    # --- Linear 4 (H -> T), stored straight into the (B, T) output ----------
    o_ref[...] = jnp.dot(h.astype(jnp.bfloat16), w4_ref[...],
                         preferred_element_type=jnp.float32) + b4_ref[...]


@jax.jit
def generator_forward(x, w1, w23, w4, aux, b4):
    """x: (B, T) float32.  Returns (B, T) float32."""
    B, T = x.shape
    H = w1.shape[1]
    flops = 2 * B * (T * H + H * H + H * T) + 12 * B * H
    bytes_accessed = (x.size * 4 + w1.size * 2 + w23.size * 2 + w4.size * 2
                      + aux.size * 4 + b4.size * 4 + B * T * 4)
    return pl.pallas_call(
        generator_kernel,
        out_shape=jax.ShapeDtypeStruct((B, T), jnp.float32),
        in_specs=[_VMEM_SPEC] * 6,
        out_specs=_VMEM_SPEC,
        cost_estimate=pl.CostEstimate(flops=flops, transcendentals=2 * H,
                                      bytes_accessed=bytes_accessed),
    )(x, w1, w23, w4, aux, b4)


# ----------------------------------------------------------------------------
# Plain-JAX glue: deterministic init, spectral normalization, param packing.
# ----------------------------------------------------------------------------
def spectral_normalize(w, n_iters=30):
    """w: (out, in) PyTorch-style weight. Returns w / sigma_max(w)."""
    out_dim, _ = w.shape
    u = jnp.ones((out_dim,), jnp.float32) / jnp.sqrt(out_dim)
    v = None
    for _ in range(n_iters):
        v = w.T @ u
        v = v / (jnp.linalg.norm(v) + 1e-12)
        u = w @ v
        u = u / (jnp.linalg.norm(u) + 1e-12)
    sigma = u @ (w @ v)
    return w / sigma


def make_params(key, transition_size, latent_dim, hidden_dim):
    """Returns raw (unfused) f32 params in x @ W + b layout."""
    dims = [
        (hidden_dim, transition_size),  # Linear 1: (out, in)
        (latent_dim, hidden_dim),       # Linear 2
        (hidden_dim, latent_dim),       # Linear 3
        (transition_size, hidden_dim),  # Linear 4
    ]
    keys = jax.random.split(key, 2 * len(dims))
    weights, biases = [], []
    for i, (dout, din) in enumerate(dims):
        bound = 1.0 / jnp.sqrt(din)
        w = jax.random.uniform(keys[2 * i], (dout, din), jnp.float32, -bound, bound)
        b = jax.random.uniform(keys[2 * i + 1], (dout,), jnp.float32, -bound, bound)
        w = spectral_normalize(w)          # spectral_norm(Linear) weight hook
        weights.append(w.T)                # (in, out) for x @ W
        biases.append(b.reshape(1, dout))

    g1 = jnp.ones((1, hidden_dim), jnp.float32)
    be1 = jnp.zeros((1, hidden_dim), jnp.float32)
    g2 = jnp.ones((1, hidden_dim), jnp.float32)
    be2 = jnp.zeros((1, hidden_dim), jnp.float32)

    return (
        weights[0], biases[0], g1, be1,
        weights[1], biases[1],
        weights[2], biases[2], g2, be2,
        weights[3], biases[3],
    )


def pack_params(params):
    """Fuse Linear2/Linear3 and pack params into the kernel's operand layout."""
    (w1, b1, g1, be1, w2, b2, w3, b3, g2, be2, w4, b4) = params
    H = w1.shape[1]

    # Exact algebraic fusion of the back-to-back linears (no nonlinearity
    # between them): h @ w2 @ w3 + (b2 @ w3 + b3).
    w23 = w2 @ w3                 # (H, H)
    b23 = b2 @ w3 + b3            # (1, H)

    aux = jnp.zeros((8, H), jnp.float32)
    aux = aux.at[0:6, :].set(jnp.concatenate([b1, g1, be1, b23, g2, be2], axis=0))

    return (w1.astype(jnp.bfloat16),
            w23.astype(jnp.bfloat16),
            w4.astype(jnp.bfloat16),
            aux,
            b4.astype(jnp.float32))


def reference_forward(x, params):
    """Pure-JAX reference: original module structure under the SAME
    mixed-precision policy as the kernel (bf16 weights, bf16 activation casts
    before each matmul, f32 accumulation, f32 BN/ReLU/bias math), with
    textbook two-pass BatchNorm (un-folded)."""
    (w1, b1, g1, be1, w2, b2, w3, b3, g2, be2, w4, b4) = params
    q = lambda a: a.astype(jnp.bfloat16)
    dot = lambda a, b: jnp.dot(q(a), q(b), preferred_element_type=jnp.float32)

    def bn(h, g, be):
        m = jnp.mean(h, axis=0, keepdims=True)
        v = jnp.mean((h - m) ** 2, axis=0, keepdims=True)
        return g * (h - m) / jnp.sqrt(v + EPS) + be

    w23 = w2 @ w3                 # exact fusion of Linear2∘Linear3 (f32 algebra)
    b23 = b2 @ w3 + b3

    h = dot(x, w1) + b1
    h = jnp.maximum(bn(h, g1, be1), 0.0)
    h = dot(h, w23) + b23
    h = jnp.maximum(bn(h, g2, be2), 0.0)
    return dot(h, w4) + b4


# TODO(synk): PyTorch training-mode BatchNorm1d also updates running_mean/var
# as a side effect and spectral_norm updates its persistent `u` each forward;
# those are parameter/state updates, not part of the returned tensor, and are
# not reproduced here (spectral normalization itself is applied in glue).

if __name__ == "__main__":
    # Small shapes consistent with the module: transitions: (batch, transition_size)
    batch, transition_size, latent_dim, hidden_dim = 8, 16, 8, 32

    key = jax.random.PRNGKey(0)
    k_params, k_x = jax.random.split(key)
    params = make_params(k_params, transition_size, latent_dim, hidden_dim)
    w1, w23, w4, aux, b4 = pack_params(params)
    x = jax.random.normal(k_x, (batch, transition_size), jnp.float32)

    out = generator_forward(x, w1, w23, w4, aux, b4)
    out = jax.block_until_ready(out)

    ref = reference_forward(x, params)
    assert out.shape == (batch, transition_size)
    max_err = float(jnp.max(jnp.abs(out - ref)))
    assert jnp.allclose(out, ref, atol=5e-3, rtol=5e-3), (
        f"mismatch vs. JAX reference (max abs err {max_err})")

    print("KERNEL_OK")
</pallas_src>

<mosaic_0001>
module attributes {stable_mosaic.version = 11 : i64} {
  func.func @generator_kernel(%arg0: memref<8x16xf32, #tpu.memory_space<vmem>>, %arg1: memref<16x32xbf16, #tpu.memory_space<vmem>>, %arg2: memref<32x32xbf16, #tpu.memory_space<vmem>>, %arg3: memref<32x16xbf16, #tpu.memory_space<vmem>>, %arg4: memref<8x32xf32, #tpu.memory_space<vmem>>, %arg5: memref<1x16xf32, #tpu.memory_space<vmem>>, %arg6: memref<8x16xf32, #tpu.memory_space<vmem>>) attributes {dimension_semantics = [], scalar_prefetch = 0 : i64, scratch_operands = 0 : i64, tpu.core_type = #tpu.core_type<tc>} {
    %c0 = arith.constant 0 : index
    %c0_0 = arith.constant 0 : index
    %0 = vector.load %arg4[%c0, %c0_0] : memref<8x32xf32, #tpu.memory_space<vmem>>, vector<1x32xf32>
    %c1 = arith.constant 1 : index
    %c0_1 = arith.constant 0 : index
    %1 = vector.load %arg4[%c1, %c0_1] : memref<8x32xf32, #tpu.memory_space<vmem>>, vector<1x32xf32>
    %c2 = arith.constant 2 : index
    %c0_2 = arith.constant 0 : index
    %2 = vector.load %arg4[%c2, %c0_2] : memref<8x32xf32, #tpu.memory_space<vmem>>, vector<1x32xf32>
    %c3 = arith.constant 3 : index
    %c0_3 = arith.constant 0 : index
    %3 = vector.load %arg4[%c3, %c0_3] : memref<8x32xf32, #tpu.memory_space<vmem>>, vector<1x32xf32>
    %c4 = arith.constant 4 : index
    %c0_4 = arith.constant 0 : index
    %4 = vector.load %arg4[%c4, %c0_4] : memref<8x32xf32, #tpu.memory_space<vmem>>, vector<1x32xf32>
    %c5 = arith.constant 5 : index
    %c0_5 = arith.constant 0 : index
    %5 = vector.load %arg4[%c5, %c0_5] : memref<8x32xf32, #tpu.memory_space<vmem>>, vector<1x32xf32>
    %c0_6 = arith.constant 0 : index
    %c0_7 = arith.constant 0 : index
    %6 = vector.load %arg0[%c0_6, %c0_7] : memref<8x16xf32, #tpu.memory_space<vmem>>, vector<8x16xf32>
    %7 = arith.truncf %6 : vector<8x16xf32> to vector<8x16xbf16>
    %c0_8 = arith.constant 0 : index
    %c0_9 = arith.constant 0 : index
    %8 = vector.load %arg1[%c0_8, %c0_9] : memref<16x32xbf16, #tpu.memory_space<vmem>>, vector<16x32xbf16>
    %cst = arith.constant dense<0.000000e+00> : vector<8x32xf32>
    %9 = tpu.matmul %7, %8, %cst {dimension_numbers = #tpu.dot_dimension_numbers<[1], [0], [0], [1], [0, 0, 1, 1], [], []>} : vector<8x16xbf16>, vector<16x32xbf16>, vector<8x32xf32> -> vector<8x32xf32>
    %10 = vector.broadcast %0 : vector<1x32xf32> to vector<8x32xf32>
    %11 = arith.addf %9, %10 : vector<8x32xf32>
    %cst_10 = arith.constant dense<0.000000e+00> : vector<32xf32>
    %12 = vector.multi_reduction <add>, %11, %cst_10 [0] : vector<8x32xf32> to vector<32xf32>
    %13 = vector.shape_cast %12 : vector<32xf32> to vector<1x32xf32>
    %cst_11 = arith.constant 8.000000e+00 : f32
    %14 = vector.broadcast %cst_11 : f32 to vector<1x32xf32>
    %15 = arith.divf %13, %14 : vector<1x32xf32>
    %16 = arith.mulf %11, %11 : vector<8x32xf32>
    %cst_12 = arith.constant dense<0.000000e+00> : vector<32xf32>
    %17 = vector.multi_reduction <add>, %16, %cst_12 [0] : vector<8x32xf32> to vector<32xf32>
    %18 = vector.shape_cast %17 : vector<32xf32> to vector<1x32xf32>
    %cst_13 = arith.constant 8.000000e+00 : f32
    %19 = vector.broadcast %cst_13 : f32 to vector<1x32xf32>
    %20 = arith.divf %18, %19 : vector<1x32xf32>
    %21 = arith.mulf %15, %15 : vector<1x32xf32>
    %22 = arith.subf %20, %21 : vector<1x32xf32>
    %cst_14 = arith.constant 9.99999974E-6 : f32
    %23 = vector.broadcast %cst_14 : f32 to vector<1x32xf32>
    %24 = arith.addf %22, %23 : vector<1x32xf32>
    %25 = math.rsqrt %24 : vector<1x32xf32>
    %26 = arith.mulf %1, %25 : vector<1x32xf32>
    %27 = arith.mulf %15, %26 : vector<1x32xf32>
    %28 = arith.subf %2, %27 : vector<1x32xf32>
    %29 = vector.broadcast %26 : vector<1x32xf32> to vector<8x32xf32>
    %30 = arith.mulf %11, %29 : vector<8x32xf32>
    %31 = vector.broadcast %28 : vector<1x32xf32> to vector<8x32xf32>
    %32 = arith.addf %30, %31 : vector<8x32xf32>
    %cst_15 = arith.constant 0.000000e+00 : f32
    %33 = vector.broadcast %cst_15 : f32 to vector<8x32xf32>
    %34 = arith.maximumf %32, %33 : vector<8x32xf32>
    %35 = arith.truncf %34 : vector<8x32xf32> to vector<8x32xbf16>
    %c0_16 = arith.constant 0 : index
    %c0_17 = arith.constant 0 : index
    %36 = vector.load %arg2[%c0_16, %c0_17] : memref<32x32xbf16, #tpu.memory_space<vmem>>, vector<32x32xbf16>
    %cst_18 = arith.constant dense<0.000000e+00> : vector<8x32xf32>
    %37 = tpu.matmul %35, %36, %cst_18 {dimension_numbers = #tpu.dot_dimension_numbers<[1], [0], [0], [1], [0, 0, 1, 1], [], []>} : vector<8x32xbf16>, vector<32x32xbf16>, vector<8x32xf32> -> vector<8x32xf32>
    %38 = vector.broadcast %3 : vector<1x32xf32> to vector<8x32xf32>
    %39 = arith.addf %37, %38 : vector<8x32xf32>
    %cst_19 = arith.constant dense<0.000000e+00> : vector<32xf32>
    %40 = vector.multi_reduction <add>, %39, %cst_19 [0] : vector<8x32xf32> to vector<32xf32>
    %41 = vector.shape_cast %40 : vector<32xf32> to vector<1x32xf32>
    %cst_20 = arith.constant 8.000000e+00 : f32
    %42 = vector.broadcast %cst_20 : f32 to vector<1x32xf32>
    %43 = arith.divf %41, %42 : vector<1x32xf32>
    %44 = arith.mulf %39, %39 : vector<8x32xf32>
    %cst_21 = arith.constant dense<0.000000e+00> : vector<32xf32>
    %45 = vector.multi_reduction <add>, %44, %cst_21 [0] : vector<8x32xf32> to vector<32xf32>
    %46 = vector.shape_cast %45 : vector<32xf32> to vector<1x32xf32>
    %cst_22 = arith.constant 8.000000e+00 : f32
    %47 = vector.broadcast %cst_22 : f32 to vector<1x32xf32>
    %48 = arith.divf %46, %47 : vector<1x32xf32>
    %49 = arith.mulf %43, %43 : vector<1x32xf32>
    %50 = arith.subf %48, %49 : vector<1x32xf32>
    %cst_23 = arith.constant 9.99999974E-6 : f32
    %51 = vector.broadcast %cst_23 : f32 to vector<1x32xf32>
    %52 = arith.addf %50, %51 : vector<1x32xf32>
    %53 = math.rsqrt %52 : vector<1x32xf32>
    %54 = arith.mulf %4, %53 : vector<1x32xf32>
    %55 = arith.mulf %43, %54 : vector<1x32xf32>
    %56 = arith.subf %5, %55 : vector<1x32xf32>
    %57 = vector.broadcast %54 : vector<1x32xf32> to vector<8x32xf32>
    %58 = arith.mulf %39, %57 : vector<8x32xf32>
    %59 = vector.broadcast %56 : vector<1x32xf32> to vector<8x32xf32>
    %60 = arith.addf %58, %59 : vector<8x32xf32>
    %cst_24 = arith.constant 0.000000e+00 : f32
    %61 = vector.broadcast %cst_24 : f32 to vector<8x32xf32>
    %62 = arith.maximumf %60, %61 : vector<8x32xf32>
    %63 = arith.truncf %62 : vector<8x32xf32> to vector<8x32xbf16>
    %c0_25 = arith.constant 0 : index
    %c0_26 = arith.constant 0 : index
    %64 = vector.load %arg3[%c0_25, %c0_26] : memref<32x16xbf16, #tpu.memory_space<vmem>>, vector<32x16xbf16>
    %cst_27 = arith.constant dense<0.000000e+00> : vector<8x16xf32>
    %65 = tpu.matmul %63, %64, %cst_27 {dimension_numbers = #tpu.dot_dimension_numbers<[1], [0], [0], [1], [0, 0, 1, 1], [], []>} : vector<8x32xbf16>, vector<32x16xbf16>, vector<8x16xf32> -> vector<8x16xf32>
    %c0_28 = arith.constant 0 : index
    %c0_29 = arith.constant 0 : index
    %66 = vector.load %arg5[%c0_28, %c0_29] : memref<1x16xf32, #tpu.memory_space<vmem>>, vector<1x16xf32>
    %67 = vector.broadcast %66 : vector<1x16xf32> to vector<8x16xf32>
    %68 = arith.addf %65, %67 : vector<8x16xf32>
    %c0_30 = arith.constant 0 : index
    %c0_31 = arith.constant 0 : index
    %69 = vector.load %arg6[%c0_30, %c0_31] : memref<8x16xf32, #tpu.memory_space<vmem>>, vector<8x16xf32>
    tpu.vector_store %arg6[%c0_30, %c0_31], %68 {strides = array<i32>} : memref<8x16xf32, #tpu.memory_space<vmem>>, vector<8x16xf32>,
    return
  }
}

</mosaic_0001>

<llo_original>
// kernel: generator_forward.1
$region0: #{generator_forward.1}
  #allocation0 [shape = 'u32[]', space=smem, size = 0x4, offset = 0x4, fixed_abs, tag = 'smem constant byte address 0x4 - core index']
  #allocation1 [shape = 'u32[144,128]{1,0:T(1,128)}', space=vmem, size = 0x12000, scoped, tag = 'internal scratch']
  %s0 = inlined_call_operand.vmem [shape: f32[8,16], index: 0, kind: input, shape index: {}]
  %s1 = inlined_call_operand.hbm [shape: bf16[16,32], index: 1, kind: input, shape index: {}]
  %s2 = inlined_call_operand.vmem [shape: bf16[32,32], index: 2, kind: input, shape index: {}]
  %s3 = inlined_call_operand.vmem [shape: bf16[32,16], index: 3, kind: input, shape index: {}]
  %s4 = inlined_call_operand.hbm [shape: f32[8,32], index: 4, kind: input, shape index: {}]
  %s5 = inlined_call_operand.vmem [shape: f32[1,16], index: 5, kind: input, shape index: {}]
  %s6 = inlined_call_operand.hbm [shape: f32[8,16], index: 6, kind: output, shape index: {}]
  %s7 = sld [smem:[#allocation0]]
  $region42: #{generator_forward.1} parent=0
    _
  %s9 = ssub.s32 1, %s7
  %s10 = scalar_select 0, %s9, %s7
  $region1: #{generator_forward.1} parent=0
    #allocation2 [shape = 'u8[4096]{0}', space=vmem, size = 0x1000, scoped, tag = 'input window, operand 1, single buffered']
    #allocation3 [shape = 's32[1]{0}', space=sflag, size = 0x4, scoped, tag = 'scoped memory for generator_forward.1']
    #allocation4 [shape = 's32[1]{0}', space=sflag, size = 0x4, scoped, tag = 'scoped memory for generator_forward.1']
    #allocation5 [shape = 'u8[4096]{0}', space=vmem, size = 0x1000, scoped, tag = 'input window, operand 4, single buffered']
    #allocation6 [shape = 's32[1]{0}', space=sflag, size = 0x4, scoped, tag = 'scoped memory for generator_forward.1']
    #allocation7 [shape = 'u8[4096]{0}', space=vmem, size = 0x1000, scoped, tag = 'output window, operand 0, single buffered']
    %11 = vsyncpa [#allocation3], 0
    %12 = vsyncpa [#allocation6], 0
    %13 = vsyncpa [#allocation4], 0
    // Predicated region
    $region2: #{generator_forward.1} parent=1 // pred_check
      _
    $region3: #{generator_forward.1} parent=1 // pred_check_branch
      %15 = sbr.rel (0) target = $region5
    $region4: #{generator_forward.1} parent=1 // pred_region
      _
    $region5: #{generator_forward.1} parent=1 // pred_fallthru
      _
    // Predicated region
    $region6: #{generator_forward.1} parent=1 // pred_check
      _
    $region7: #{generator_forward.1} parent=1 // pred_check_branch
      %17 = sbr.rel (0) target = $region9
    $region8: #{generator_forward.1} parent=1 // pred_region
      %s19 = ssub.s32 128, 128
      %20 = vsyncadd [#allocation3], %s19
      %s21 = sshll.u32 [#allocation2], 4
      %s22 = int_to_ptr.vmem [resolvable:$true] %s21
      %27 = dma.hbm_to_vmem [thread:$0]  %s1, 128, %s22, [#allocation3], 64, 64, 4
    $region9: #{generator_forward.1} parent=1 // pred_fallthru
      _
    // Predicated region
    $region10: #{generator_forward.1} parent=1 // pred_check
      _
    $region11: #{generator_forward.1} parent=1 // pred_check_branch
      %29 = sbr.rel (0) target = $region13
    $region12: #{generator_forward.1} parent=1 // pred_region
      _
    $region13: #{generator_forward.1} parent=1 // pred_fallthru
      _
    // Predicated region
    $region14: #{generator_forward.1} parent=1 // pred_check
      _
    $region15: #{generator_forward.1} parent=1 // pred_check_branch
      %31 = sbr.rel (0) target = $region17
    $region16: #{generator_forward.1} parent=1 // pred_region
      _
    $region17: #{generator_forward.1} parent=1 // pred_fallthru
      _
    // Predicated region
    $region18: #{generator_forward.1} parent=1 // pred_check
      _
    $region19: #{generator_forward.1} parent=1 // pred_check_branch
      %33 = sbr.rel (0) target = $region21
    $region20: #{generator_forward.1} parent=1 // pred_region
      %s35 = ssub.s32 128, 128
      %36 = vsyncadd [#allocation6], %s35
      %s38 = sshll.u32 [#allocation5], 4
      %s39 = int_to_ptr.vmem [resolvable:$true] %s38
      %41 = dma.hbm_to_vmem [thread:$0]  %s4, 128, %s39, [#allocation6]
    $region21: #{generator_forward.1} parent=1 // pred_fallthru
      _
    // Predicated region
    $region22: #{generator_forward.1} parent=1 // pred_check
      _
    $region23: #{generator_forward.1} parent=1 // pred_check_branch
      %43 = sbr.rel (0) target = $region25
    $region24: #{generator_forward.1} parent=1 // pred_region
      _
    $region25: #{generator_forward.1} parent=1 // pred_fallthru
      _
    // Predicated region
    $region26: #{generator_forward.1} parent=1 // pred_check
      _
    $region27: #{generator_forward.1} parent=1 // pred_check_branch
      %45 = sbr.rel (0) target = $region29
    $region28: #{generator_forward.1} parent=1 // pred_region
      %46 = dma.done [#allocation3], 128
    $region29: #{generator_forward.1} parent=1 // pred_fallthru
      _
    // Predicated region
    $region30: #{generator_forward.1} parent=1 // pred_check
      _
    $region31: #{generator_forward.1} parent=1 // pred_check_branch
      %48 = sbr.rel (0) target = $region33
    $region32: #{generator_forward.1} parent=1 // pred_region
      %49 = dma.done [#allocation6], 128
    $region33: #{generator_forward.1} parent=1 // pred_fallthru
      _
    %v51 = vld [vmem:[#allocation5] sm:$0x1]
    %v52 = vld [vmem:[#allocation5 + $0x1] sm:$0x1]
    %v53 = vld [vmem:[#allocation5 + $0x2] sm:$0x1]
    %v54 = vld [vmem:[#allocation5 + $0x3] sm:$0x1]
    %v55 = vld [vmem:[#allocation5 + $0x4] sm:$0x1]
    %v56 = vld [vmem:[#allocation5 + $0x5] sm:$0x1]
    %v57 = vld [vmem:[%s0] sm:$0xff]
    %v58 = vpack.c.bf16 %v57, %v57
    %v59 = vld [vmem:[#allocation2] sm:$0xf]
    %v60 = vld [vmem:[#allocation2 + $0x4] sm:$0xf]
    %v61 = vlaneseq
    %v62 = vshrl.u32 %v61, 7
    %v63 = vsub.s32 0, %v62
    %v64 = vrot.slane %v51, %v63
    %v67 = vunpack.c.l.b16 %v59
    %v68 = vunpack.c.l.b16 %v60
    %v69 = vpack.c.b16 %v68, %v67
    %vm71 = vcmask 130048
    %v73 = vsel %vm71, %v58, 0
    %75 = vmatprep.subr.bf16.mxu0 0
    %76 = vmatpush1.bf16.msra.mxu0 %v69
    %77 = vmatprep.subr.bf16.mxu0 0
    %78 = vmatpush1.bf16.msra.mxu0 0
    %79 = vmatprep.subr.bf16.mxu0 0
    %80 = vmatpush1.bf16.msra.mxu0 0
    %81 = vmatprep.subr.bf16.mxu0 0
    %82 = vmatpush1.bf16.msra.mxu0 0
    %83 = vmatprep.subr.bf16.mxu0 0
    %84 = vmatpush1.bf16.msra.mxu0 0
    %85 = vmatprep.subr.bf16.mxu0 0
    %86 = vmatpush1.bf16.msra.mxu0 0
    %87 = vmatprep.subr.bf16.mxu0 0
    %88 = vmatpush1.bf16.msra.mxu0 0
    %89 = vmatprep.subr.bf16.mxu0 0
    %90 = vmatpush1.bf16.msra.mxu0 0
    %91 = vmatprep.subr.bf16.mxu0 0
    %92 = vmatpush1.bf16.msra.mxu0 0
    %93 = vmatprep.subr.bf16.mxu0 0
    %94 = vmatpush1.bf16.msra.mxu0 0
    %95 = vmatprep.subr.bf16.mxu0 0
    %96 = vmatpush1.bf16.msra.mxu0 0
    %97 = vmatprep.subr.bf16.mxu0 0
    %98 = vmatpush1.bf16.msra.mxu0 0
    %99 = vmatprep.subr.bf16.mxu0 0
    %100 = vmatpush1.bf16.msra.mxu0 0
    %101 = vmatprep.subr.bf16.mxu0 0
    %102 = vmatpush1.bf16.msra.mxu0 0
    %103 = vmatprep.subr.bf16.mxu0 0
    %104 = vmatpush1.bf16.msra.mxu0 0
    %105 = vmatprep.subr.bf16.mxu0 0
    %106 = vmatpush1.bf16.msra.mxu0 0
    %107 = vmatprep.mubr.bf16.mxu0 0
    %108 = vmatmul.mubr.bf16.gmra.mrb[0].mxu0 %v73
    %v109 = vpop.f32.mrb[0].mxu0
    %v110 = vadd.f32 %v64, %v109
    %v111 = vpop.f32.mrb[0].mxu0
    %v112 = vpop.f32.mrb[0].mxu0
    %v113 = vpop.f32.mrb[0].mxu0
    %114 = vdwg.mxu0
    %vm115 = vcmask 261120
    %v116 = vsel %vm115, %v110, 0.0
    %v117 = vrot.slane %v116, 4
    %v118 = vadd.f32 %v116, %v117
    %v119 = vrot.slane %v118, 2
    %v120 = vadd.f32 %v118, %v119
    %v121 = vrot.slane %v120, 1
    %v122 = vadd.f32 %v120, %v121
    %v123 = vrcp.pop 8.0
    %v124 = vmul.f32 %v122, %v123
    %v125 = vmul.f32 %v110, %v110
    %v126 = vsel %vm115, %v125, 0.0
    %v127 = vrot.slane %v126, 4
    %v128 = vadd.f32 %v126, %v127
    %v129 = vrot.slane %v128, 2
    %v130 = vadd.f32 %v128, %v129
    %v131 = vrot.slane %v130, 1
    %v132 = vadd.f32 %v130, %v131
    %v133 = vmul.f32 %v132, %v123
    %v134 = vmul.f32 %v124, %v124
    %v135 = vsub.f32 %v133, %v134
    %v136 = vadd.f32 %v135, 1e-05
    %v137 = vrsqrt.pop %v136
    %v138 = vmul.f32 %v52, %v137
    %v139 = vmul.f32 %v124, %v138
    %v140 = vsub.f32 %v53, %v139
    %v141 = vlaneseq
    %v142 = vshrl.u32 %v141, 7
    %v143 = vsub.s32 0, %v142
    %v144 = vrot.slane %v138, %v143
    %v145 = vmul.f32 %v110, %v144
    %v146 = vlaneseq
    %v147 = vshrl.u32 %v146, 7
    %v148 = vsub.s32 0, %v147
    %v149 = vrot.slane %v140, %v148
    %v150 = vadd.f32 %v145, %v149
    %v151 = vmax.f32 %v150, 0.0
    %v152 = vpack.c.bf16 %v151, %v151
    %v153 = vld [vmem:[%s2] sm:$0xf]
    %v154 = vld [vmem:[%s2 + $0x4] sm:$0xf]
    %v155 = vld [vmem:[%s2 + $0x8] sm:$0xf]
    %v156 = vld [vmem:[%s2 + $0xc] sm:$0xf]
    %v157 = vlaneseq
    %v158 = vshrl.u32 %v157, 7
    %v159 = vsub.s32 0, %v158
    %v160 = vrot.slane %v54, %v159
    %v165 = vunpack.c.l.b16 %v153
    %v166 = vunpack.c.l.b16 %v154
    %v167 = vunpack.c.l.b16 %v155
    %v168 = vunpack.c.l.b16 %v156
    %v169 = vpack.c.b16 %v166, %v165
    %v170 = vpack.c.b16 %v168, %v167
    %v174 = vsel %vm115, %v152, 0
    %176 = vmatprep.subr.bf16.mxu0 0
    %177 = vmatpush1.bf16.msra.mxu0 %v169
    %178 = vmatprep.subr.bf16.mxu0 0
    %179 = vmatpush1.bf16.msra.mxu0 %v170
    %180 = vmatprep.subr.bf16.mxu0 0
    %181 = vmatpush1.bf16.msra.mxu0 0
    %182 = vmatprep.subr.bf16.mxu0 0
    %183 = vmatpush1.bf16.msra.mxu0 0
    %184 = vmatprep.subr.bf16.mxu0 0
    %185 = vmatpush1.bf16.msra.mxu0 0
    %186 = vmatprep.subr.bf16.mxu0 0
    %187 = vmatpush1.bf16.msra.mxu0 0
    %188 = vmatprep.subr.bf16.mxu0 0
    %189 = vmatpush1.bf16.msra.mxu0 0
    %190 = vmatprep.subr.bf16.mxu0 0
    %191 = vmatpush1.bf16.msra.mxu0 0
    %192 = vmatprep.subr.bf16.mxu0 0
    %193 = vmatpush1.bf16.msra.mxu0 0
    %194 = vmatprep.subr.bf16.mxu0 0
    %195 = vmatpush1.bf16.msra.mxu0 0
    %196 = vmatprep.subr.bf16.mxu0 0
    %197 = vmatpush1.bf16.msra.mxu0 0
    %198 = vmatprep.subr.bf16.mxu0 0
    %199 = vmatpush1.bf16.msra.mxu0 0
    %200 = vmatprep.subr.bf16.mxu0 0
    %201 = vmatpush1.bf16.msra.mxu0 0
    %202 = vmatprep.subr.bf16.mxu0 0
    %203 = vmatpush1.bf16.msra.mxu0 0
    %204 = vmatprep.subr.bf16.mxu0 0
    %205 = vmatpush1.bf16.msra.mxu0 0
    %206 = vmatprep.subr.bf16.mxu0 0
    %207 = vmatpush1.bf16.msra.mxu0 0
    %208 = vmatprep.mubr.bf16.mxu0 0
    %209 = vmatmul.mubr.bf16.gmra.mrb[0].mxu0 %v174
    %v210 = vpop.f32.mrb[0].mxu0
    %v211 = vadd.f32 %v160, %v210
    %v212 = vpop.f32.mrb[0].mxu0
    %v213 = vpop.f32.mrb[0].mxu0
    %v214 = vpop.f32.mrb[0].mxu0
    %215 = vdwg.mxu0
    %v216 = vsel %vm115, %v211, 0.0
    %v217 = vrot.slane %v216, 4
    %v218 = vadd.f32 %v216, %v217
    %v219 = vrot.slane %v218, 2
    %v220 = vadd.f32 %v218, %v219
    %v221 = vrot.slane %v220, 1
    %v222 = vadd.f32 %v220, %v221
    %v223 = vmul.f32 %v222, %v123
    %v224 = vmul.f32 %v211, %v211
    %v225 = vsel %vm115, %v224, 0.0
    %v226 = vrot.slane %v225, 4
    %v227 = vadd.f32 %v225, %v226
    %v228 = vrot.slane %v227, 2
    %v229 = vadd.f32 %v227, %v228
    %v230 = vrot.slane %v229, 1
    %v231 = vadd.f32 %v229, %v230
    %v232 = vmul.f32 %v231, %v123
    %v233 = vmul.f32 %v223, %v223
    %v234 = vsub.f32 %v232, %v233
    %v235 = vadd.f32 %v234, 1e-05
    %v236 = vrsqrt.pop %v235
    %v237 = vmul.f32 %v55, %v236
    %v238 = vmul.f32 %v223, %v237
    %v239 = vsub.f32 %v56, %v238
    %v240 = vlaneseq
    %v241 = vshrl.u32 %v240, 7
    %v242 = vsub.s32 0, %v241
    %v243 = vrot.slane %v237, %v242
    %v244 = vmul.f32 %v211, %v243
    %v245 = vlaneseq
    %v246 = vshrl.u32 %v245, 7
    %v247 = vsub.s32 0, %v246
    %v248 = vrot.slane %v239, %v247
    %v249 = vadd.f32 %v244, %v248
    %v250 = vmax.f32 %v249, 0.0
    %v251 = vpack.c.bf16 %v250, %v250
    %v252 = vld [vmem:[%s3] sm:$0xf]
    %v253 = vld [vmem:[%s3 + $0x4] sm:$0xf]
    %v254 = vld [vmem:[%s3 + $0x8] sm:$0xf]
    %v255 = vld [vmem:[%s3 + $0xc] sm:$0xf]
    %v256 = vld [vmem:[%s5] sm:$0x1]
    %v258 = vlaneseq
    %v259 = vshrl.u32 %v258, 7
    %v260 = vsub.s32 0, %v259
    %v261 = vrot.slane %v256, %v260
    %v267 = vunpack.c.l.b16 %v252
    %v268 = vunpack.c.l.b16 %v253
    %v269 = vunpack.c.l.b16 %v254
    %v270 = vunpack.c.l.b16 %v255
    %v271 = vpack.c.b16 %v268, %v267
    %v272 = vpack.c.b16 %v270, %v269
    %v276 = vsel %vm115, %v251, 0
    %278 = vmatprep.subr.bf16.mxu0 0
    %279 = vmatpush1.bf16.msra.mxu0 %v271
    %280 = vmatprep.subr.bf16.mxu0 0
    %281 = vmatpush1.bf16.msra.mxu0 %v272
    %282 = vmatprep.subr.bf16.mxu0 0
    %283 = vmatpush1.bf16.msra.mxu0 0
    %284 = vmatprep.subr.bf16.mxu0 0
    %285 = vmatpush1.bf16.msra.mxu0 0
    %286 = vmatprep.subr.bf16.mxu0 0
    %287 = vmatpush1.bf16.msra.mxu0 0
    %288 = vmatprep.subr.bf16.mxu0 0
    %289 = vmatpush1.bf16.msra.mxu0 0
    %290 = vmatprep.subr.bf16.mxu0 0
    %291 = vmatpush1.bf16.msra.mxu0 0
    %292 = vmatprep.subr.bf16.mxu0 0
    %293 = vmatpush1.bf16.msra.mxu0 0
    %294 = vmatprep.subr.bf16.mxu0 0
    %295 = vmatpush1.bf16.msra.mxu0 0
    %296 = vmatprep.subr.bf16.mxu0 0
    %297 = vmatpush1.bf16.msra.mxu0 0
    %298 = vmatprep.subr.bf16.mxu0 0
    %299 = vmatpush1.bf16.msra.mxu0 0
    %300 = vmatprep.subr.bf16.mxu0 0
    %301 = vmatpush1.bf16.msra.mxu0 0
    %302 = vmatprep.subr.bf16.mxu0 0
    %303 = vmatpush1.bf16.msra.mxu0 0
    %304 = vmatprep.subr.bf16.mxu0 0
    %305 = vmatpush1.bf16.msra.mxu0 0
    %306 = vmatprep.subr.bf16.mxu0 0
    %307 = vmatpush1.bf16.msra.mxu0 0
    %308 = vmatprep.subr.bf16.mxu0 0
    %309 = vmatpush1.bf16.msra.mxu0 0
    %310 = vmatprep.mubr.bf16.mxu0 0
    %311 = vmatmul.mubr.bf16.gmra.mrb[0].mxu0 %v276
    %v312 = vpop.f32.mrb[0].mxu0
    %v313 = vadd.f32 %v261, %v312
    %v314 = vpop.f32.mrb[0].mxu0
    %v315 = vpop.f32.mrb[0].mxu0
    %v316 = vpop.f32.mrb[0].mxu0
    %317 = vdwg.mxu0
    %318 = vst.msk [vmem:[#allocation7] sm:$0xff] %vm71, %v313
    // Predicated region
    $region34: #{generator_forward.1} parent=1 // pred_check
      _
    $region35: #{generator_forward.1} parent=1 // pred_check_branch
      %320 = sbr.rel (0) target = $region37
    $region36: #{generator_forward.1} parent=1 // pred_region
      %s322 = ssub.s32 128, 128
      %323 = vsyncadd [#allocation4], %s322
      %s325 = sshll.u32 [#allocation7], 4
      %s326 = int_to_ptr.vmem [resolvable:$true] %s325
      %328 = dma.vmem_to_hbm [thread:$0]  %s326, 128, %s6, [#allocation4]
    $region37: #{generator_forward.1} parent=1 // pred_fallthru
      _
    // Predicated region
    $region38: #{generator_forward.1} parent=1 // pred_check
      _
    $region39: #{generator_forward.1} parent=1 // pred_check_branch
      %330 = sbr.rel (0) target = $region41
    $region40: #{generator_forward.1} parent=1 // pred_region
      %331 = dma.done [#allocation4], 128
    $region41: #{generator_forward.1} parent=1 // pred_fallthru
      _
    %332 = vsyncpa [#allocation3], 1
    %333 = vsyncpa [#allocation6], 1
    %334 = vsyncpa [#allocation4], 1

</llo_original>
